<compile_context>
chip_gen: v6e
topology: v6e:2x2x1
jax: 0.10.0
libtpu: 0.0.40
codegen_flags: <defaults>
</compile_context>

<pallas_src>
import jax
import jax.numpy as jnp
from jax.experimental import pallas as pl
from jax.experimental.pallas import tpu as pltpu


def _round_up(x, m):
    return (x + m - 1) // m * m


def _gather_kernel(idx_ref, w_ref, out_ref):
    # idx_ref: (block_b, 1) int32  -- indices for this output tile (VMEM)
    # w_ref:   (N_pad, D_pad)      -- whole padded embedding table (VMEM)
    # out_ref: (block_b, D_pad)    -- output tile
    block_b = out_ref.shape[0]
    n_pad = w_ref.shape[0]

    idx = idx_ref[...]                                               # (block_b, 1)
    iota = jax.lax.broadcasted_iota(jnp.int32, (block_b, n_pad), 1)  # (block_b, N_pad)
    onehot = (iota == idx).astype(w_ref.dtype)                       # exact 0/1 rows

    # Batched gather as a one-hot matmul on the MXU (exact for f32 tables:
    # only one nonzero term per output element).
    out_ref[...] = jnp.dot(
        onehot, w_ref[...], preferred_element_type=jnp.float32
    ).astype(out_ref.dtype)


def embedding_lookup(weight, indices, *, block_b=None):
    """out[i] = weight[indices[i]] via a Pallas TPU one-hot-matmul gather."""
    N, D = weight.shape
    orig_shape = indices.shape
    idx_flat = indices.reshape(-1)
    B = idx_flat.shape[0]

    D_pad = _round_up(D, 128)          # lane-dense output stores
    N_pad = _round_up(N, 256)          # MXU-native contraction tile (v6e/v7x)
    if block_b is None:
        block_b = min(128, _round_up(max(B, 1), 8))   # adapt to small batches
    B_pad = _round_up(B, block_b)      # pad batch instead of asserting

    w = weight
    if (N_pad, D_pad) != (N, D):
        w = jnp.pad(w, ((0, N_pad - N), (0, D_pad - D)))

    # Clamp indices: an out-of-range id must never become an OOB read.
    idx = jnp.clip(idx_flat.astype(jnp.int32), 0, N - 1)
    if B_pad != B:
        idx = jnp.pad(idx, (0, B_pad - B))       # padded rows gather row 0
    idx2d = idx.reshape(B_pad, 1)

    table_bytes = N_pad * D_pad * 4
    out_tile_bytes = block_b * D_pad * 4
    # table (double-buffered by the pipeline) + output tiles + indices + slack
    vmem_needed = 2 * table_bytes + 2 * out_tile_bytes + 2 * block_b * 4 + (4 << 20)
    vmem_limit = min(max(vmem_needed, 32 * 1024 * 1024), 128 * 1024 * 1024)

    cost = pl.CostEstimate(
        flops=2 * B_pad * N_pad * D_pad,
        transcendentals=0,
        bytes_accessed=table_bytes + B_pad * D_pad * 4 + B_pad * 4,
    )

    out = pl.pallas_call(
        _gather_kernel,
        out_shape=jax.ShapeDtypeStruct((B_pad, D_pad), weight.dtype),
        grid_spec=pl.GridSpec(
            grid=(B_pad // block_b,),
            in_specs=[
                pl.BlockSpec((block_b, 1), lambda i: (i, 0)),    # index block
                pl.BlockSpec((N_pad, D_pad), lambda i: (0, 0)),  # constant table block
            ],
            out_specs=pl.BlockSpec((block_b, D_pad), lambda i: (i, 0)),
        ),
        compiler_params=pltpu.CompilerParams(
            dimension_semantics=("parallel",),   # independent tiles -> v7x 2-TC sharding
            vmem_limit_bytes=vmem_limit,
        ),
        cost_estimate=cost,
    )(idx2d, w)

    return out[:B, :D].reshape(*orig_shape, D)


def build_sharded_embedding_table(n_embeddings, d_embeddings, device_list, key):
    """Mimic Embedding.__init__: per-shard randn weights, concatenated into the
    logical (n_embeddings, d_embeddings) table that forward() indexes."""
    n_shards = len(device_list) + 1
    items_per_shard = (n_embeddings + n_shards - 1) // n_shards
    shards = []
    for _ in device_list:
        key, sub = jax.random.split(key)
        shards.append(jax.random.normal(sub, (items_per_shard, d_embeddings),
                                        dtype=jnp.float32))
    items_remained = n_embeddings - (n_shards - 1) * items_per_shard
    if items_remained > 0:
        key, sub = jax.random.split(key)
        shards.append(jax.random.normal(sub, (items_remained, d_embeddings),
                                        dtype=jnp.float32))
    return jnp.concatenate(shards, axis=0)


if __name__ == "__main__":
    key = jax.random.PRNGKey(0)

    n_embeddings = 40      # small synthetic table
    d_embeddings = 128     # lane-aligned embedding dim
    rank = 0
    device_list = [0, 1]   # -> 3 shards: 14 + 14 + 12 rows

    k_tab, k_idx = jax.random.split(key)
    table = build_sharded_embedding_table(
        n_embeddings, d_embeddings, device_list, k_tab)
    assert table.shape == (n_embeddings, d_embeddings)

    indices = jax.random.randint(k_idx, (16,), 0, n_embeddings, dtype=jnp.int32)

    out = embedding_lookup(table, indices)
    out = jax.block_until_ready(out)

    ref = table[indices]
    assert out.shape == (16, d_embeddings)
    assert out.dtype == jnp.float32
    assert jnp.allclose(out, ref), "Pallas gather mismatch vs reference"

    # Also exercise a batch that is not a multiple of the tile (tail padding).
    idx2 = jax.random.randint(jax.random.PRNGKey(7), (13,), 0, n_embeddings,
                              dtype=jnp.int32)
    out2 = jax.block_until_ready(embedding_lookup(table, idx2))
    assert jnp.allclose(out2, table[idx2]), "Pallas gather mismatch (tail case)"

    print("KERNEL_OK")
</pallas_src>

<mosaic_0001>
module attributes {stable_mosaic.version = 11 : i64} {
  func.func @_gather_kernel(%arg0: i32, %arg1: memref<16x1xi32, #tpu.memory_space<vmem>>, %arg2: memref<256x128xf32, #tpu.memory_space<vmem>>, %arg3: memref<16x128xf32, #tpu.memory_space<vmem>>) attributes {dimension_semantics = [#tpu.dimension_semantics<parallel>], iteration_bounds = array<i64: 1>, scalar_prefetch = 0 : i64, scratch_operands = 0 : i64, tpu.core_type = #tpu.core_type<tc>, window_params = [{transform_indices = @transform_0, window_bounds = array<i64: 16, 1>}, {pipeline_mode = #tpu.pipeline_mode<synchronous>, transform_indices = @transform_1, window_bounds = array<i64: 256, 128>}, {transform_indices = @transform_2, window_bounds = array<i64: 16, 128>}]} {
    %c0 = arith.constant 0 : index
    %c0_0 = arith.constant 0 : index
    %0 = vector.load %arg1[%c0, %c0_0] : memref<16x1xi32, #tpu.memory_space<vmem>>, vector<16x1xi32>
    %1 = tpu.iota {dimensions = array<i32: 1>} : vector<16x256xi32>
    %2 = vector.broadcast %0 : vector<16x1xi32> to vector<16x256xi32>
    %3 = arith.cmpi eq, %1, %2 : vector<16x256xi32>
    %4 = arith.extui %3 : vector<16x256xi1> to vector<16x256xi32>
    %5 = arith.sitofp %4 : vector<16x256xi32> to vector<16x256xf32>
    %c0_1 = arith.constant 0 : index
    %c0_2 = arith.constant 0 : index
    %6 = vector.load %arg2[%c0_1, %c0_2] : memref<256x128xf32, #tpu.memory_space<vmem>>, vector<256x128xf32>
    %cst = arith.constant dense<0.000000e+00> : vector<16x128xf32>
    %7 = tpu.matmul %5, %6, %cst {dimension_numbers = #tpu.dot_dimension_numbers<[1], [0], [0], [1], [0, 0, 1, 1], [], []>} : vector<16x256xf32>, vector<256x128xf32>, vector<16x128xf32> -> vector<16x128xf32>
    %c0_3 = arith.constant 0 : index
    %c0_4 = arith.constant 0 : index
    %8 = vector.load %arg3[%c0_3, %c0_4] : memref<16x128xf32, #tpu.memory_space<vmem>>, vector<16x128xf32>
    tpu.vector_store %arg3[%c0_3, %c0_4], %7 {strides = array<i32>} : memref<16x128xf32, #tpu.memory_space<vmem>>, vector<16x128xf32>,
    return
  }
  func.func @transform_0(%arg0: i32) -> (i32, i32) {
    %c0_i32 = arith.constant 0 : i32
    %c0_i32_0 = arith.constant 0 : i32
    return %arg0, %c0_i32 : i32, i32
  }
  func.func @transform_1(%arg0: i32) -> (i32, i32) {
    %c0_i32 = arith.constant 0 : i32
    %c0_i32_0 = arith.constant 0 : i32
    %c0_i32_1 = arith.constant 0 : i32
    return %c0_i32, %c0_i32_0 : i32, i32
  }
  func.func @transform_2(%arg0: i32) -> (i32, i32) {
    %c0_i32 = arith.constant 0 : i32
    %c0_i32_0 = arith.constant 0 : i32
    return %arg0, %c0_i32 : i32, i32
  }
}

</mosaic_0001>

<llo_original>
// kernel: tpu_custom_call.1
$region0: #{tpu_custom_call.1}
  #allocation0 [shape = 'u32[]', space=smem, size = 0x4, offset = 0x4, fixed_abs, tag = 'smem constant byte address 0x4 - core index']
  #allocation1 [shape = 'u32[144,128]{1,0:T(1,128)}', space=vmem, size = 0x12000, scoped, tag = 'internal scratch']
  %s0 = inlined_call_operand.vmem [shape: s32[16,1], index: 0, kind: input, shape index: {}]
  %s1 = inlined_call_operand.hbm [shape: f32[256,128], index: 1, kind: input, shape index: {}]
  %s2 = inlined_call_operand.hbm [shape: f32[16,128], index: 2, kind: output, shape index: {}]
  %s3 = sld [smem:[#allocation0]]
  $region22: #{tpu_custom_call.1} parent=0
    _
  %s5 = ssub.s32 1, %s3
  %s6 = scalar_select 0, %s5, %s3
  $region1: #{tpu_custom_call.1} parent=0
    #allocation2 [shape = 'u8[131072]{0}', space=vmem, size = 0x20000, scoped, tag = 'input window, operand 1, single buffered']
    #allocation3 [shape = 's32[1]{0}', space=sflag, size = 0x4, scoped, tag = 'scoped memory for tpu_custom_call.1']
    #allocation4 [shape = 's32[1]{0}', space=sflag, size = 0x4, scoped, tag = 'scoped memory for tpu_custom_call.1']
    #allocation5 [shape = 'u8[8192]{0}', space=vmem, size = 0x2000, scoped, tag = 'output window, operand 0, single buffered']
    %7 = vsyncpa [#allocation3], 0
    %8 = vsyncpa [#allocation4], 0
    // Predicated region
    $region2: #{tpu_custom_call.1} parent=1 // pred_check
      _
    $region3: #{tpu_custom_call.1} parent=1 // pred_check_branch
      %10 = sbr.rel (0) target = $region5
    $region4: #{tpu_custom_call.1} parent=1 // pred_region
      _
    $region5: #{tpu_custom_call.1} parent=1 // pred_fallthru
      _
    // Predicated region
    $region6: #{tpu_custom_call.1} parent=1 // pred_check
      _
    $region7: #{tpu_custom_call.1} parent=1 // pred_check_branch
      %12 = sbr.rel (0) target = $region9
    $region8: #{tpu_custom_call.1} parent=1 // pred_region
      %s14 = ssub.s32 4096, 4096
      %15 = vsyncadd [#allocation3], %s14
      %s16 = sshll.u32 [#allocation2], 4
      %s17 = int_to_ptr.vmem [resolvable:$true] %s16
      %22 = dma.hbm_to_vmem [thread:$0]  %s1, 4096, %s17, [#allocation3], 128, 128, 8
    $region9: #{tpu_custom_call.1} parent=1 // pred_fallthru
      _
    // Predicated region
    $region10: #{tpu_custom_call.1} parent=1 // pred_check
      _
    $region11: #{tpu_custom_call.1} parent=1 // pred_check_branch
      %24 = sbr.rel (0) target = $region13
    $region12: #{tpu_custom_call.1} parent=1 // pred_region
      %25 = dma.done [#allocation3], 4096
    $region13: #{tpu_custom_call.1} parent=1 // pred_fallthru
      _
    %v26 = vld [vmem:[%s0] sm:$0xff]
    %v27 = vld [vmem:[%s0 + $0x8] sm:$0xff]
    %v28 = vlaneseq
    %v29 = vand.u32 %v28, 127
    %v30 = vadd.s32 %v29, 128
    %31 = vset.pattern.permute.xlu0 0
    %32 = vperm.xlu0 %31, %v26
    %v33 = vpop.permute.xlu0 %32
    %34 = vset.pattern.permute.xlu0 0
    %35 = vperm.xlu0 %34, %v27
    %v36 = vpop.permute.xlu0 %35
    %vm37 = vcmp.eq.s32.totalorder %v29, %v33
    %vm38 = vcmp.eq.s32.totalorder %v30, %v33
    %vm39 = vcmp.eq.s32.totalorder %v29, %v36
    %vm40 = vcmp.eq.s32.totalorder %v30, %v36
    %v41 = vsel %vm37, 1, 0
    %v42 = vsel %vm38, 1, 0
    %v43 = vsel %vm39, 1, 0
    %v44 = vsel %vm40, 1, 0
    %v45 = vcvt.s32.f32 %v41
    %v46 = vcvt.s32.f32 %v42
    %v47 = vcvt.s32.f32 %v43
    %v48 = vcvt.s32.f32 %v44
    %v49 = vld [vmem:[#allocation2] sm:$0xff]
    %v50 = vld [vmem:[#allocation2 + $0x8] sm:$0xff]
    %v51 = vld [vmem:[#allocation2 + $0x10] sm:$0xff]
    %v52 = vld [vmem:[#allocation2 + $0x18] sm:$0xff]
    %v53 = vld [vmem:[#allocation2 + $0x20] sm:$0xff]
    %v54 = vld [vmem:[#allocation2 + $0x28] sm:$0xff]
    %v55 = vld [vmem:[#allocation2 + $0x30] sm:$0xff]
    %v56 = vld [vmem:[#allocation2 + $0x38] sm:$0xff]
    %v57 = vld [vmem:[#allocation2 + $0x40] sm:$0xff]
    %v58 = vld [vmem:[#allocation2 + $0x48] sm:$0xff]
    %v59 = vld [vmem:[#allocation2 + $0x50] sm:$0xff]
    %v60 = vld [vmem:[#allocation2 + $0x58] sm:$0xff]
    %v61 = vld [vmem:[#allocation2 + $0x60] sm:$0xff]
    %v62 = vld [vmem:[#allocation2 + $0x68] sm:$0xff]
    %v63 = vld [vmem:[#allocation2 + $0x70] sm:$0xff]
    %v64 = vld [vmem:[#allocation2 + $0x78] sm:$0xff]
    %v65 = vld [vmem:[#allocation2 + $0x80] sm:$0xff]
    %v66 = vld [vmem:[#allocation2 + $0x88] sm:$0xff]
    %v67 = vld [vmem:[#allocation2 + $0x90] sm:$0xff]
    %v68 = vld [vmem:[#allocation2 + $0x98] sm:$0xff]
    %v69 = vld [vmem:[#allocation2 + $0xa0] sm:$0xff]
    %v70 = vld [vmem:[#allocation2 + $0xa8] sm:$0xff]
    %v71 = vld [vmem:[#allocation2 + $0xb0] sm:$0xff]
    %v72 = vld [vmem:[#allocation2 + $0xb8] sm:$0xff]
    %v73 = vld [vmem:[#allocation2 + $0xc0] sm:$0xff]
    %v74 = vld [vmem:[#allocation2 + $0xc8] sm:$0xff]
    %v75 = vld [vmem:[#allocation2 + $0xd0] sm:$0xff]
    %v76 = vld [vmem:[#allocation2 + $0xd8] sm:$0xff]
    %v77 = vld [vmem:[#allocation2 + $0xe0] sm:$0xff]
    %v78 = vld [vmem:[#allocation2 + $0xe8] sm:$0xff]
    %v79 = vld [vmem:[#allocation2 + $0xf0] sm:$0xff]
    %v80 = vld [vmem:[#allocation2 + $0xf8] sm:$0xff]
    %81 = vmatprep.subr.mxu0 0.0
    %82 = vmatpush1.msra.mxu0 %v64
    %83 = vmatprep.subr.mxu0 0.0
    %84 = vmatpush1.msra.mxu0 %v63
    %85 = vmatprep.subr.mxu0 0.0
    %86 = vmatpush1.msra.mxu0 %v62
    %87 = vmatprep.subr.mxu0 0.0
    %88 = vmatpush1.msra.mxu0 %v61
    %89 = vmatprep.subr.mxu0 0.0
    %90 = vmatpush1.msra.mxu0 %v60
    %91 = vmatprep.subr.mxu0 0.0
    %92 = vmatpush1.msra.mxu0 %v59
    %93 = vmatprep.subr.mxu0 0.0
    %94 = vmatpush1.msra.mxu0 %v58
    %95 = vmatprep.subr.mxu0 0.0
    %96 = vmatpush1.msra.mxu0 %v57
    %97 = vmatprep.subr.mxu0 0.0
    %98 = vmatpush1.msra.mxu0 %v56
    %99 = vmatprep.subr.mxu0 0.0
    %100 = vmatpush1.msra.mxu0 %v55
    %101 = vmatprep.subr.mxu0 0.0
    %102 = vmatpush1.msra.mxu0 %v54
    %103 = vmatprep.subr.mxu0 0.0
    %104 = vmatpush1.msra.mxu0 %v53
    %105 = vmatprep.subr.mxu0 0.0
    %106 = vmatpush1.msra.mxu0 %v52
    %107 = vmatprep.subr.mxu0 0.0
    %108 = vmatpush1.msra.mxu0 %v51
    %109 = vmatprep.subr.mxu0 0.0
    %110 = vmatpush1.msra.mxu0 %v50
    %111 = vmatprep.subr.mxu0 0.0
    %112 = vmatpush1.msra.mxu0 %v49
    %113 = vmatprep.subr.mxu0 0.0
    %114 = vmatpush2.msra.mxu0 %v80
    %115 = vmatprep.subr.mxu0 0.0
    %116 = vmatpush2.msra.mxu0 %v79
    %117 = vmatprep.subr.mxu0 0.0
    %118 = vmatpush2.msra.mxu0 %v78
    %119 = vmatprep.subr.mxu0 0.0
    %120 = vmatpush2.msra.mxu0 %v77
    %121 = vmatprep.subr.mxu0 0.0
    %122 = vmatpush2.msra.mxu0 %v76
    %123 = vmatprep.subr.mxu0 0.0
    %124 = vmatpush2.msra.mxu0 %v75
    %125 = vmatprep.subr.mxu0 0.0
    %126 = vmatpush2.msra.mxu0 %v74
    %127 = vmatprep.subr.mxu0 0.0
    %128 = vmatpush2.msra.mxu0 %v73
    %129 = vmatprep.subr.mxu0 0.0
    %130 = vmatpush2.msra.mxu0 %v72
    %131 = vmatprep.subr.mxu0 0.0
    %132 = vmatpush2.msra.mxu0 %v71
    %133 = vmatprep.subr.mxu0 0.0
    %134 = vmatpush2.msra.mxu0 %v70
    %135 = vmatprep.subr.mxu0 0.0
    %136 = vmatpush2.msra.mxu0 %v69
    %137 = vmatprep.subr.mxu0 0.0
    %138 = vmatpush2.msra.mxu0 %v68
    %139 = vmatprep.subr.mxu0 0.0
    %140 = vmatpush2.msra.mxu0 %v67
    %141 = vmatprep.subr.mxu0 0.0
    %142 = vmatpush2.msra.mxu0 %v66
    %143 = vmatprep.subr.mxu0 0.0
    %144 = vmatpush2.msra.mxu0 %v65
    %145 = vmatprep.mubr.f32.mxu0 %v46
    %146 = vmatmul.mubr.f32.gmra.mxu0 %v45
    %v147 = vpop.f32.mrf.mxu0
    %v148 = vadd.f32 0.0, %v147
    %v149 = vpop.f32.mrf.mxu0
    %150 = vmatprep.mubr.f32.mxu0 %v48
    %151 = vmatmul.mubr.f32.gmra.mxu0 %v47
    %v152 = vpop.f32.mrf.mxu0
    %v153 = vadd.f32 0.0, %v152
    %v154 = vpop.f32.mrf.mxu0
    %155 = vdwg.mxu0
    %156 = vst [vmem:[#allocation5] sm:$0xff] %v148
    %157 = vst [vmem:[#allocation5 + $0x8] sm:$0xff] %v153
    // Predicated region
    $region14: #{tpu_custom_call.1} parent=1 // pred_check
      _
    $region15: #{tpu_custom_call.1} parent=1 // pred_check_branch
      %159 = sbr.rel (0) target = $region17
    $region16: #{tpu_custom_call.1} parent=1 // pred_region
      %s161 = ssub.s32 256, 256
      %162 = vsyncadd [#allocation4], %s161
      %s163 = sshll.u32 [#allocation5], 4
      %s164 = int_to_ptr.vmem [resolvable:$true] %s163
      %169 = dma.vmem_to_hbm [thread:$0]  %s164, 256, %s2, [#allocation4], 128, 128, 8
    $region17: #{tpu_custom_call.1} parent=1 // pred_fallthru
      _
    // Predicated region
    $region18: #{tpu_custom_call.1} parent=1 // pred_check
      _
    $region19: #{tpu_custom_call.1} parent=1 // pred_check_branch
      %171 = sbr.rel (0) target = $region21
    $region20: #{tpu_custom_call.1} parent=1 // pred_region
      %172 = dma.done [#allocation4], 256
    $region21: #{tpu_custom_call.1} parent=1 // pred_fallthru
      _
    %173 = vsyncpa [#allocation3], 1
    %174 = vsyncpa [#allocation4], 1

</llo_original>
